<compile_context>
chip_gen: v5e
topology: v5e:2x2
jax: 0.10.0
libtpu: 0.0.40
codegen_flags: <defaults>
</compile_context>

<pallas_src>
import jax
import jax.numpy as jnp
from jax.experimental import pallas as pl
from jax.experimental.pallas import tpu as pltpu

_LANES = 1024                         # lane-dense last dim (multiple of 128)
_BLOCK_ROWS = 512                     # 512 x 1024 x 4B = 2 MiB f32 tile
_FUSED_MAX_BYTES = 4 * 1024 * 1024    # padded slab <= 4 MiB -> single fused kernel


def _fused_kernel(x_ref, o_ref):
    """Whole (padded) tensor resident in VMEM: single-pass global softmax."""
    e = jnp.exp(x_ref[...].astype(jnp.float32))
    denom = jnp.sum(e)                                  # exact f32 sum
    o_ref[...] = (e / denom).astype(o_ref.dtype)        # exact divide (no approx)


def _sumexp_kernel(x_ref, acc_ref):
    """Pass 1: accumulate per-lane partial sums of exp(x) into a resident (1, LANES) output."""
    @pl.when(pl.program_id(0) == 0)
    def _init():
        acc_ref[...] = jnp.zeros_like(acc_ref)

    e = jnp.exp(x_ref[...].astype(jnp.float32))
    acc_ref[...] += jnp.sum(e, axis=0, keepdims=True)   # sublane reduce only (XLU)


def _scale_kernel(inv_ref, x_ref, o_ref):
    """Pass 2: recompute exp(x) and scale by the exact scalar reciprocal (SMEM)."""
    inv = inv_ref[0]
    e = jnp.exp(x_ref[...].astype(jnp.float32))
    o_ref[...] = (e * inv).astype(o_ref.dtype)


def softmax(x: jax.Array) -> jax.Array:
    """Global softmax: exp(x) / exp(x).sum() over ALL elements (PyTorch ref semantics)."""
    orig_shape = x.shape
    orig_dtype = x.dtype
    n = x.size

    rows = -(-n // _LANES)
    rows8 = max(8, ((rows + 7) // 8) * 8)               # multiple of 8 sublanes
    fused = rows8 * _LANES * 4 <= _FUSED_MAX_BYTES

    if fused:
        padded_rows = rows8
    else:
        padded_rows = -(-rows // _BLOCK_ROWS) * _BLOCK_ROWS
    n_pad = padded_rows * _LANES

    xf = x.reshape(-1)
    if n_pad > n:
        # Pad with -inf so exp(pad) == 0 and the denominator is unaffected.
        xf = jnp.pad(xf, (0, n_pad - n), constant_values=-jnp.inf)
    x2d = xf.reshape(padded_rows, _LANES)

    if fused:
        # ---- Single fused pass: whole slab resident in VMEM -----------------
        out2d = pl.pallas_call(
            _fused_kernel,
            out_shape=jax.ShapeDtypeStruct((padded_rows, _LANES), orig_dtype),
            in_specs=[pl.BlockSpec((padded_rows, _LANES), lambda: (0, 0))],
            out_specs=pl.BlockSpec((padded_rows, _LANES), lambda: (0, 0)),
        )(x2d)
        return out2d.reshape(-1)[:n].reshape(orig_shape)

    num_blocks = padded_rows // _BLOCK_ROWS

    # ---- Pass 1: streaming per-lane partial sums of exp(x) ------------------
    partial = pl.pallas_call(
        _sumexp_kernel,
        out_shape=jax.ShapeDtypeStruct((1, _LANES), jnp.float32),
        grid_spec=pl.GridSpec(
            grid=(num_blocks,),
            in_specs=[pl.BlockSpec((_BLOCK_ROWS, _LANES), lambda i: (i, 0))],
            out_specs=pl.BlockSpec((1, _LANES), lambda i: (0, 0)),
        ),
        compiler_params=pltpu.CompilerParams(
            dimension_semantics=("arbitrary",)),
    )(x2d)

    # Final cross-lane reduce + exact scalar reciprocal, computed once.
    denom = jnp.sum(partial.astype(jnp.float32))
    inv = (1.0 / denom).reshape(1)

    # ---- Pass 2: out = exp(x) * inv, independent per tile -------------------
    out2d = pl.pallas_call(
        _scale_kernel,
        out_shape=jax.ShapeDtypeStruct((padded_rows, _LANES), orig_dtype),
        grid_spec=pl.GridSpec(
            grid=(num_blocks,),
            in_specs=[
                pl.BlockSpec(memory_space=pltpu.MemorySpace.SMEM),   # inv scalar
                pl.BlockSpec((_BLOCK_ROWS, _LANES), lambda i: (i, 0)),
            ],
            out_specs=pl.BlockSpec((_BLOCK_ROWS, _LANES), lambda i: (i, 0)),
        ),
        compiler_params=pltpu.CompilerParams(
            dimension_semantics=("parallel",)),
    )(inv, x2d)

    return out2d.reshape(-1)[:n].reshape(orig_shape)


if __name__ == "__main__":
    # 1) The module's own example input (fused path).
    x1 = jnp.array([2.0, 1.0, 0.1], dtype=jnp.float32)
    y1 = softmax(x1)
    jax.block_until_ready(y1)
    e1 = jnp.exp(x1)
    ref1 = e1 / e1.sum()
    assert y1.shape == x1.shape
    assert jnp.allclose(y1, ref1, atol=1e-6, rtol=1e-6), (y1, ref1)
    assert jnp.allclose(y1.sum(), 1.0, atol=1e-6)

    # 2) Small 2-D, non-multiple-of-128 size -> exercises the pad/mask path (fused).
    x2 = jax.random.normal(jax.random.PRNGKey(0), (16, 40), dtype=jnp.float32)
    y2 = softmax(x2)
    jax.block_until_ready(y2)
    e2 = jnp.exp(x2)
    ref2 = e2 / e2.sum()
    assert y2.shape == x2.shape
    assert jnp.allclose(y2, ref2, atol=1e-6, rtol=1e-5), (y2, ref2)
    assert jnp.allclose(y2.sum(), 1.0, atol=1e-5)

    # 3) Moderate input -> exercises the two-pass streaming path (multiple grid blocks).
    x3 = jax.random.normal(jax.random.PRNGKey(0), (256, 5000), dtype=jnp.float32)
    y3 = softmax(x3)
    jax.block_until_ready(y3)
    e3 = jnp.exp(x3)
    ref3 = e3 / e3.sum()
    assert y3.shape == x3.shape
    assert jnp.allclose(y3, ref3, atol=1e-8, rtol=1e-4), (y3, ref3)
    assert jnp.allclose(y3.sum(), 1.0, atol=5e-4)

    print("KERNEL_OK")
</pallas_src>

<mosaic_0001>
module attributes {stable_mosaic.version = 11 : i64} {
  func.func @_fused_kernel(%arg0: memref<8x1024xf32, #tpu.memory_space<vmem>>, %arg1: memref<8x1024xf32, #tpu.memory_space<vmem>>) attributes {dimension_semantics = [], scalar_prefetch = 0 : i64, scratch_operands = 0 : i64, tpu.core_type = #tpu.core_type<tc>} {
    %c0 = arith.constant 0 : index
    %c0_0 = arith.constant 0 : index
    %0 = vector.load %arg0[%c0, %c0_0] : memref<8x1024xf32, #tpu.memory_space<vmem>>, vector<8x1024xf32>
    %1 = math.exp %0 : vector<8x1024xf32>
    %2 = vector.shape_cast %1 : vector<8x1024xf32> to vector<1x8x1024xf32>
    %cst = arith.constant dense<0.000000e+00> : vector<1xf32>
    %3 = vector.multi_reduction <add>, %2, %cst [1, 2] : vector<1x8x1024xf32> to vector<1xf32>
    %4 = vector.shape_cast %3 : vector<1xf32> to vector<1x1x1xf32>
    %5 = vector.extract %4[0, 0, 0] : f32 from vector<1x1x1xf32>
    %6 = vector.broadcast %5 : f32 to vector<8x1024xf32>
    %7 = arith.divf %1, %6 : vector<8x1024xf32>
    %c0_1 = arith.constant 0 : index
    %c0_2 = arith.constant 0 : index
    %8 = vector.load %arg1[%c0_1, %c0_2] : memref<8x1024xf32, #tpu.memory_space<vmem>>, vector<8x1024xf32>
    tpu.vector_store %arg1[%c0_1, %c0_2], %7 {strides = array<i32>} : memref<8x1024xf32, #tpu.memory_space<vmem>>, vector<8x1024xf32>,
    return
  }
}

</mosaic_0001>

<llo_original>
// kernel: tpu_custom_call.1
$region0: #{tpu_custom_call.1}
  #allocation0 [shape = 'u32[]', space=smem, size = 0x4, offset = 0x4, fixed_abs, tag = 'smem constant byte address 0x4 - core index']
  #allocation1 [shape = 'u32[72,128]{1,0:T(1,128)}', space=vmem, size = 0x9000, scoped, tag = 'internal scratch']
  %s0 = inlined_call_operand.hbm [shape: f32[8,1024], index: 0, kind: input, shape index: {}]
  %s1 = inlined_call_operand.hbm [shape: f32[8,1024], index: 1, kind: output, shape index: {}]
  %s2 = sld [smem:[#allocation0]]
  $region18: #{tpu_custom_call.1} parent=0
    _
  %s4 = ssub.s32 1, %s2
  %s5 = scalar_select 0, %s4, %s2
  $region1: #{tpu_custom_call.1} parent=0
    #allocation2 [shape = 'u8[32768]{0}', space=vmem, size = 0x8000, scoped, tag = 'input window, operand 0, single buffered']
    #allocation3 [shape = 's32[1]{0}', space=sflag, size = 0x4, scoped, tag = 'scoped memory for tpu_custom_call.1']
    #allocation4 [shape = 's32[1]{0}', space=sflag, size = 0x4, scoped, tag = 'scoped memory for tpu_custom_call.1']
    #allocation5 [shape = 'u8[32768]{0}', space=vmem, size = 0x8000, scoped, tag = 'output window, operand 0, single buffered']
    %6 = vsyncpa [#allocation3], 0
    %7 = vsyncpa [#allocation4], 0
    // Predicated region
    $region2: #{tpu_custom_call.1} parent=1 // pred_check
      _
    $region3: #{tpu_custom_call.1} parent=1 // pred_check_branch
      %9 = sbr.rel (0) target = $region5
    $region4: #{tpu_custom_call.1} parent=1 // pred_region
      %11 = vsyncadd [#allocation3], 0
      %s13 = sshll.u32 %s0, 4
      %s14 = int_to_ptr.hbm [resolvable:$true] %s13
      %s15 = sshll.u32 [#allocation2], 4
      %s16 = int_to_ptr.vmem [resolvable:$true] %s15
      %18 = dma.hbm_to_vmem [thread:$0]  %s14, 1024, %s16, [#allocation3]
    $region5: #{tpu_custom_call.1} parent=1 // pred_fallthru
      _
    // Predicated region
    $region6: #{tpu_custom_call.1} parent=1 // pred_check
      _
    $region7: #{tpu_custom_call.1} parent=1 // pred_check_branch
      %20 = sbr.rel (0) target = $region9
    $region8: #{tpu_custom_call.1} parent=1 // pred_region
      %22 = dma.done [#allocation3], 1024
    $region9: #{tpu_custom_call.1} parent=1 // pred_fallthru
      _
    %v23 = vld [vmem:[#allocation2] sm:$0xff]
    %v24 = vld [vmem:[#allocation2 + $0x8] sm:$0xff]
    %v25 = vld [vmem:[#allocation2 + $0x10] sm:$0xff]
    %v26 = vld [vmem:[#allocation2 + $0x18] sm:$0xff]
    %v27 = vld [vmem:[#allocation2 + $0x20] sm:$0xff]
    %v28 = vld [vmem:[#allocation2 + $0x28] sm:$0xff]
    %v29 = vld [vmem:[#allocation2 + $0x30] sm:$0xff]
    %v30 = vld [vmem:[#allocation2 + $0x38] sm:$0xff]
    %v31 = vmul.f32 %v23, 1.442695
    %v32 = vpow.pop %v31
    %v33 = vmul.f32 %v24, 1.442695
    %v34 = vpow.pop %v33
    %v35 = vmul.f32 %v25, 1.442695
    %v36 = vpow.pop %v35
    %v37 = vmul.f32 %v26, 1.442695
    %v38 = vpow.pop %v37
    %v39 = vmul.f32 %v27, 1.442695
    %v40 = vpow.pop %v39
    %v41 = vmul.f32 %v28, 1.442695
    %v42 = vpow.pop %v41
    %v43 = vmul.f32 %v29, 1.442695
    %v44 = vpow.pop %v43
    %v45 = vmul.f32 %v30, 1.442695
    %v46 = vpow.pop %v45
    %v47 = vadd.f32 %v32, %v34
    %v48 = vadd.f32 %v47, %v36
    %v49 = vadd.f32 %v48, %v38
    %v50 = vadd.f32 %v49, %v40
    %v51 = vadd.f32 %v50, %v42
    %v52 = vadd.f32 %v51, %v44
    %v53 = vadd.f32 %v52, %v46
    %54 = vadd.xlane.f32.xlu0 %v53
    %v55 = vpop.xlane.xlu0 %54
    %v56 = vrot.slane %v55, 4
    %v57 = vadd.f32 %v55, %v56
    %v58 = vrot.slane %v57, 2
    %v59 = vadd.f32 %v57, %v58
    %v60 = vrot.slane %v59, 1
    %v61 = vadd.f32 %v59, %v60
    %s62 = vtos %v61
    %v63 = vstv %s62
    %v64 = vrcp.pop %v63
    %v65 = vmul.f32 %v63, %v64
    %v66 = vsub.f32 1.0, %v65
    %v67 = vmul.f32 %v64, %v66
    %v68 = vadd.f32 %v64, %v67
    %vm69 = vweird.f32 %v63
    %vm70 = vweird.f32 %v64
    %vm71 = vmor %vm69, %vm70
    %v72 = vsel %vm71, %v64, %v68
    %v73 = vand.u32 2147483647, %v63
    %vm74 = vcmp.eq.f32.partialorder %v73, 8.507059e+37
    %v75 = vand.u32 %v63, 2147483648
    %v76 = vor.u32 1.1754944e-38, %v75
    %v77 = vsel %vm74, %v76, %v72
    %v78 = vmul.f32 %v32, %v77
    %v79 = vmul.f32 %v34, %v77
    %v80 = vmul.f32 %v36, %v77
    %v81 = vmul.f32 %v38, %v77
    %v82 = vmul.f32 %v40, %v77
    %v83 = vmul.f32 %v42, %v77
    %v84 = vmul.f32 %v44, %v77
    %v85 = vmul.f32 %v46, %v77
    %86 = vst [vmem:[#allocation5] sm:$0xff] %v78
    %87 = vst [vmem:[#allocation5 + $0x8] sm:$0xff] %v79
    %88 = vst [vmem:[#allocation5 + $0x10] sm:$0xff] %v80
    %89 = vst [vmem:[#allocation5 + $0x18] sm:$0xff] %v81
    %90 = vst [vmem:[#allocation5 + $0x20] sm:$0xff] %v82
    %91 = vst [vmem:[#allocation5 + $0x28] sm:$0xff] %v83
    %92 = vst [vmem:[#allocation5 + $0x30] sm:$0xff] %v84
    %93 = vst [vmem:[#allocation5 + $0x38] sm:$0xff] %v85
    // Predicated region
    $region10: #{tpu_custom_call.1} parent=1 // pred_check
      _
    $region11: #{tpu_custom_call.1} parent=1 // pred_check_branch
      %95 = sbr.rel (0) target = $region13
    $region12: #{tpu_custom_call.1} parent=1 // pred_region
      %97 = vsyncadd [#allocation4], 0
      %s99 = sshll.u32 [#allocation5], 4
      %s100 = int_to_ptr.vmem [resolvable:$true] %s99
      %s101 = sshll.u32 %s1, 4
      %s102 = int_to_ptr.hbm [resolvable:$true] %s101
      %104 = dma.vmem_to_hbm [thread:$0]  %s100, 1024, %s102, [#allocation4]
    $region13: #{tpu_custom_call.1} parent=1 // pred_fallthru
      _
    // Predicated region
    $region14: #{tpu_custom_call.1} parent=1 // pred_check
      _
    $region15: #{tpu_custom_call.1} parent=1 // pred_check_branch
      %106 = sbr.rel (0) target = $region17
    $region16: #{tpu_custom_call.1} parent=1 // pred_region
      %108 = dma.done [#allocation4], 1024
    $region17: #{tpu_custom_call.1} parent=1 // pred_fallthru
      _
    %109 = vsyncpa [#allocation3], 1
    %110 = vsyncpa [#allocation4], 1

</llo_original>
